<compile_context>
chip_gen: v7x
topology: tpu7x:2x2x1
jax: 0.10.0
libtpu: 0.0.40
codegen_flags: <defaults>
</compile_context>

<pallas_src>
import functools

import jax
import jax.numpy as jnp
import numpy as np
from jax.experimental import pallas as pl
from jax.experimental.pallas import tpu as pltpu

EPS = 1e-5


# ----------------------------- kernel ---------------------------------------
def _bottle_block_kernel(roll_amounts, inv_n, mxu_dtype, per_tap,
                         x_ref, mask_ref,
                         w1_ref, g1_ref, b1_ref,
                         w2_ref, g2_ref, b2_ref,
                         w3_ref, g3_ref, b3_ref,
                         o_ref):
    x = x_ref[...]          # (C8, L) f32; zero at padding pixels / dead channels / tail
    mask = mask_ref[...]    # (1, L)   1.0 at interior pixels, 0.0 elsewhere

    def bn(o, g_ref, b_ref):
        # PyTorch train-mode BN: batch stats over the N*H*W interior pixels,
        # biased variance, folded into per-channel scale/shift (one FMA pass).
        om = o * mask
        mean = jnp.sum(om, axis=1, keepdims=True) * inv_n             # (C8, 1)
        var = jnp.sum(om * om, axis=1, keepdims=True) * inv_n - mean * mean
        var = jnp.maximum(var, 0.0)                                   # guard cancellation
        scale = jax.lax.rsqrt(var + EPS) * g_ref[...]                 # rsqrt -> EUP
        shift = b_ref[...] - mean * scale
        return o * scale + shift

    # ---- conv1 (1x1) -> bn1 -> relu -----------------------------------------
    o1 = jnp.dot(w1_ref[...], x.astype(mxu_dtype),
                 preferred_element_type=jnp.float32)
    # Mask (o1 feeds the 3x3 halo reads) and cast ONCE before the 9-tap fan-out.
    o1 = (jnp.maximum(bn(o1, g1_ref, b1_ref), 0.0) * mask).astype(mxu_dtype)

    # ---- conv2 (3x3, stride=1, pad=1): taps via XLU lane rolls of o1 --------
    # No zero-extended copy: wrapped lanes only reach non-interior / tail
    # columns (each image carries a full padding frame; see wrapper assert),
    # which BN mask-filters and the wrapper crops.
    def tap(k):
        return pltpu.roll(o1, k, axis=1) if k else o1

    if per_tap:
        # v7x path: 9 accumulated (C8xC8)@(C8xL) matmuls (MRB accumulates in
        # place in the MXU result RAM) — no (9*C8, L) col buffer.
        o2 = None
        for t, k in enumerate(roll_amounts):                  # w2_ref: (9, C8, C8)
            part = jnp.dot(w2_ref[t], tap(k), preferred_element_type=jnp.float32)
            o2 = part if o2 is None else o2 + part
    else:
        # v5e/v6e path: one big-K (K = 9*C8) contraction, col built directly in
        # the MXU dtype.                                      # w2_ref: (C8, 9*C8)
        col = jnp.concatenate([tap(k) for k in roll_amounts], axis=0)
        o2 = jnp.dot(w2_ref[...], col, preferred_element_type=jnp.float32)
    # No mask here: non-interior columns are finite garbage and get cropped by
    # the wrapper; BN stats are mask-filtered.
    o2 = jnp.maximum(bn(o2, g2_ref, b2_ref), 0.0)

    # ---- conv3 (1x1) -> bn3 -> (+ residual) -> relu -------------------------
    o3 = jnp.dot(w3_ref[...], o2.astype(mxu_dtype),
                 preferred_element_type=jnp.float32)
    o3 = bn(o3, g3_ref, b3_ref)
    o_ref[...] = jnp.maximum(o3 + x, 0.0).astype(o_ref.dtype)


# --------------------------- packing helpers --------------------------------
def _device_is_v7x():
    try:
        return "v7" in jax.devices()[0].device_kind.lower()
    except Exception:
        return False


def _channel_pad(C, mxu_dtype):
    # bf16 packs 2 rows per sublane -> keep C8 a multiple of 16 so the 9 tap
    # pieces stay tile-aligned when stacked on the sublane axis.
    q = 16 if mxu_dtype == jnp.bfloat16 else 8
    return max(q, ((C + q - 1) // q) * q)


def pack_input(x_nchw, C8):
    """NCHW -> lane-dense packed activations (C8, L) + interior mask (1, L)."""
    N, C, H, W = x_nchw.shape
    Hp, Wp = H + 2, W + 2
    P = N * Hp * Wp
    L = pl.cdiv(P, 128) * 128
    f32 = jnp.float32
    xp = jnp.pad(x_nchw.astype(f32), ((0, 0), (0, 0), (1, 1), (1, 1)))     # (N,C,Hp,Wp)
    x_t = jnp.transpose(xp, (1, 0, 2, 3)).reshape(C, P)
    x_t = jnp.pad(x_t, ((0, C8 - C), (0, L - P)))                          # (C8, L)
    mask = jnp.pad(jnp.ones((N, 1, H, W), f32), ((0, 0), (0, 0), (1, 1), (1, 1)))
    mask = jnp.pad(mask.reshape(1, P), ((0, 0), (0, L - P)))               # (1, L)
    return x_t, mask


def unpack_output(out_t, N, C, H, W):
    Hp, Wp = H + 2, W + 2
    P = N * Hp * Wp
    out = out_t[:C, :P].reshape(C, N, Hp, Wp)
    return jnp.transpose(out, (1, 0, 2, 3))[:, :, 1:-1, 1:-1]              # crop halo


def pack_params(params, C8, mxu_dtype, per_tap):
    """Pad + pre-cast weights to the MXU dtype in the wrapper (cast once, not per call)."""
    C = params["conv1_w"].shape[0]
    f32 = jnp.float32

    def pack_1x1(w):                 # (Cout,Cin,1,1) -> (C8,C8), MXU dtype
        return jnp.pad(w[:, :, 0, 0].astype(f32),
                       ((0, C8 - C), (0, C8 - C))).astype(mxu_dtype)

    def pack_3x3(w):                 # (Cout,Cin,3,3) -> taps ky-major, MXU dtype
        wt = jnp.transpose(w.astype(f32), (0, 2, 3, 1))                    # (Cout,ky,kx,Cin)
        wt = jnp.pad(wt, ((0, C8 - C), (0, 0), (0, 0), (0, C8 - C)))
        if per_tap:                  # (9, C8, C8): one clean weight block per tap
            return jnp.transpose(wt.reshape(C8, 9, C8), (1, 0, 2)).astype(mxu_dtype)
        return wt.reshape(C8, 9 * C8).astype(mxu_dtype)                    # (C8, 9*C8)

    def pack_bn(v):                  # (C,) -> (C8,1) f32 (BN math stays f32)
        return jnp.pad(v.astype(f32), (0, C8 - C)).reshape(C8, 1)

    return (pack_1x1(params["conv1_w"]), pack_bn(params["bn1_g"]), pack_bn(params["bn1_b"]),
            pack_3x3(params["conv2_w"]), pack_bn(params["bn2_g"]), pack_bn(params["bn2_b"]),
            pack_1x1(params["conv3_w"]), pack_bn(params["bn3_g"]), pack_bn(params["bn3_b"]))


# --------------------------- pallas_call wrapper -----------------------------
def bottle_block_packed(x_t, mask, packed_params, *, N, H, W, mxu_dtype, per_tap):
    """One fused BottleBlock on lane-dense packed activations (chainable)."""
    C8, L = x_t.shape
    Hp, Wp = H + 2, W + 2
    P = N * Hp * Wp
    # Halo-safety for the roll-based taps: every image carries a full one-pixel
    # padding frame, so an interior pixel (1<=h<=H, 1<=w<=W) only reads
    # neighbors (h+dy, w+dx) inside its own (Hp, Wp) frame -> no lane roll ever
    # wraps (into another image or past the tail) for an interior column.
    assert Hp >= 3 and Wp >= 3 and P <= L
    roll_amounts = tuple((-((ky - 1) * Wp + (kx - 1))) % L
                         for ky in range(3) for kx in range(3))
    inv_n = 1.0 / float(N * H * W)

    kernel = functools.partial(_bottle_block_kernel, roll_amounts, inv_n,
                               mxu_dtype, per_tap)
    vmem = pl.BlockSpec(memory_space=pltpu.MemorySpace.VMEM)
    wbytes = int(np.dtype(mxu_dtype).itemsize)
    flops = int(2 * C8 * C8 * 11 * L)                       # conv1 + 9-tap conv2 + conv3
    bytes_accessed = int(4 * (2 * C8 * L + L + 6 * C8) + wbytes * 11 * C8 * C8)

    # TODO(synk): at ResNet scale, grid/tile the lane (pixel) axis with a
    # two-phase BN (per-tile sum / sum-of-squares partials across an "arbitrary"
    # reduction axis, then a normalize/apply pass), double-buffered BlockSpecs
    # sized per generation (v7x 64 MiB VMEM vs 128 MiB on v5e/v6e),
    # dimension_semantics=("parallel", ...) for v7x's two TensorCores, and
    # input_output_aliases for the residual.  At this demo size the whole block
    # fits in VMEM as a single invocation, so tiling would only add overhead.
    return pl.pallas_call(
        kernel,
        out_shape=jax.ShapeDtypeStruct((C8, L), jnp.float32),
        in_specs=[vmem] * 11,
        out_specs=vmem,
        compiler_params=pltpu.CompilerParams(vmem_limit_bytes=32 * 1024 * 1024),
        cost_estimate=pl.CostEstimate(flops=flops, transcendentals=3 * C8,
                                      bytes_accessed=bytes_accessed),
    )(x_t, mask, *packed_params)


def bottle_block_chain_forward(x_nchw, params, n_blocks, *, mxu_dtype=None, per_tap=None):
    """Chain the same BottleBlock n_blocks times, staying in the packed (C8, L)
    layout between blocks (no NCHW / HBM round trips per block)."""
    N, Cin, H, W = x_nchw.shape
    C = params["conv1_w"].shape[0]
    assert Cin == C, "downsample is None -> inplanes must equal planes*expansion"
    if mxu_dtype is None:
        # bf16 MXU operands only pay off once the matmuls actually fill the MXU;
        # at small C the kernel is VPU/XLU-bound and the casts are pure overhead
        # (worst on v5e, which has no bf16 VPU path).
        mxu_dtype = jnp.bfloat16 if C >= 128 else jnp.float32
    if per_tap is None:
        # v7x MRB accumulates in place -> per-tap matmuls drop the col buffer;
        # v5e/v6e (MRF FIFO) prefer the single big-K contraction.
        per_tap = _device_is_v7x()
    C8 = _channel_pad(C, mxu_dtype)
    x_t, mask = pack_input(x_nchw, C8)
    pp = pack_params(params, C8, mxu_dtype, per_tap)   # packed/cast once, reused per block
    for _ in range(n_blocks):
        x_t = bottle_block_packed(x_t, mask, pp, N=N, H=H, W=W,
                                  mxu_dtype=mxu_dtype, per_tap=per_tap)
    return unpack_output(x_t, N, C, H, W)


def bottle_block_forward(x_nchw, params, *, mxu_dtype=None, per_tap=None):
    """BottleBlock forward (fresh module -> train-mode BN; stride=1, downsample=None)."""
    return bottle_block_chain_forward(x_nchw, params, 1,
                                      mxu_dtype=mxu_dtype, per_tap=per_tap)


# ---------------- pure-JAX reference (same math, NCHW) -----------------------
def ref_forward(x, params):
    def conv1x1(x, w):
        return jnp.einsum("oi,nihw->nohw", w[:, :, 0, 0], x)

    def conv3x3(x, w):
        return jax.lax.conv_general_dilated(
            x, w, window_strides=(1, 1), padding=((1, 1), (1, 1)),
            dimension_numbers=("NCHW", "OIHW", "NCHW"))

    def bn(x, g, b):
        mean = jnp.mean(x, axis=(0, 2, 3), keepdims=True)
        var = jnp.mean((x - mean) ** 2, axis=(0, 2, 3), keepdims=True)
        return ((x - mean) * jax.lax.rsqrt(var + EPS)) * g.reshape(1, -1, 1, 1) \
            + b.reshape(1, -1, 1, 1)

    out = jax.nn.relu(bn(conv1x1(x, params["conv1_w"]), params["bn1_g"], params["bn1_b"]))
    out = jax.nn.relu(bn(conv3x3(out, params["conv2_w"]), params["bn2_g"], params["bn2_b"]))
    out = bn(conv1x1(out, params["conv3_w"]), params["bn3_g"], params["bn3_b"])
    return jax.nn.relu(out + x)


if __name__ == "__main__":
    # BottleBlock(inplanes=4, planes=4, stride=1, downsample=None)
    N, C, H, W = 2, 4, 16, 16
    keys = jax.random.split(jax.random.PRNGKey(0), 8)
    kx, k1, k2, k3, k4, k5, k6, k7 = keys

    params = {
        # PyTorch conv weight layouts (OIHW), bias=False.
        "conv1_w": 0.3 * jax.random.normal(k1, (C, C, 1, 1), jnp.float32),
        "conv2_w": 0.2 * jax.random.normal(k2, (C, C, 3, 3), jnp.float32),
        "conv3_w": 0.3 * jax.random.normal(k3, (C, C, 1, 1), jnp.float32),
        # BatchNorm2d affine params (perturbed from default init to exercise the fold).
        "bn1_g": 1.0 + 0.1 * jax.random.normal(k4, (C,), jnp.float32),
        "bn1_b": 0.1 * jax.random.normal(k5, (C,), jnp.float32),
        "bn2_g": jnp.ones((C,), jnp.float32),
        "bn2_b": jnp.zeros((C,), jnp.float32),
        "bn3_g": 1.0 + 0.1 * jax.random.normal(k6, (C,), jnp.float32),
        "bn3_b": 0.05 * jax.random.normal(k7, (C,), jnp.float32),
    }
    x = jax.random.normal(kx, (N, C, H, W), jnp.float32)

    ref = jax.block_until_ready(ref_forward(x, params))

    # f32 MXU operands, both conv2 strategies (stacked big-K for v5e/v6e and
    # per-tap accumulation for v7x) so each path runs regardless of chip.
    for per_tap in (False, True):
        out = jax.block_until_ready(
            bottle_block_forward(x, params, mxu_dtype=jnp.float32, per_tap=per_tap))
        np.testing.assert_allclose(np.asarray(out), np.asarray(ref), rtol=2e-3, atol=2e-3)

    # Auto configuration (f32 at this channel count; conv2 strategy from device kind).
    out_auto = jax.block_until_ready(bottle_block_forward(x, params))
    np.testing.assert_allclose(np.asarray(out_auto), np.asarray(ref), rtol=2e-3, atol=2e-3)

    # Forced bf16 MXU operands (normally gated to C >= 128): BN stats / normalize /
    # residual stay f32 in-kernel, so only matmul-input rounding differs.
    # Tolerance tightened from 1e-1 to 5e-2 per review.
    out_bf16 = jax.block_until_ready(
        bottle_block_forward(x, params, mxu_dtype=jnp.bfloat16, per_tap=False))
    np.testing.assert_allclose(np.asarray(out_bf16), np.asarray(ref), rtol=5e-2, atol=5e-2)

    # Two blocks chained in the packed (C8, L) layout (no NCHW round trip in between).
    ref2 = jax.block_until_ready(ref_forward(ref, params))
    out2 = jax.block_until_ready(
        bottle_block_chain_forward(x, params, 2, mxu_dtype=jnp.float32, per_tap=False))
    np.testing.assert_allclose(np.asarray(out2), np.asarray(ref2), rtol=1e-2, atol=1e-2)

    print("KERNEL_OK")
</pallas_src>

<mosaic_0001>
module attributes {stable_mosaic.version = 11 : i64} {
  func.func @_bottle_block_kernel(%arg0: memref<8x768xf32, #tpu.memory_space<vmem>>, %arg1: memref<1x768xf32, #tpu.memory_space<vmem>>, %arg2: memref<8x8xf32, #tpu.memory_space<vmem>>, %arg3: memref<8x1xf32, #tpu.memory_space<vmem>>, %arg4: memref<8x1xf32, #tpu.memory_space<vmem>>, %arg5: memref<8x72xf32, #tpu.memory_space<vmem>>, %arg6: memref<8x1xf32, #tpu.memory_space<vmem>>, %arg7: memref<8x1xf32, #tpu.memory_space<vmem>>, %arg8: memref<8x8xf32, #tpu.memory_space<vmem>>, %arg9: memref<8x1xf32, #tpu.memory_space<vmem>>, %arg10: memref<8x1xf32, #tpu.memory_space<vmem>>, %arg11: memref<8x768xf32, #tpu.memory_space<vmem>>) attributes {dimension_semantics = [], scalar_prefetch = 0 : i64, scratch_operands = 0 : i64, tpu.core_type = #tpu.core_type<tc>} {
    %c0 = arith.constant 0 : index
    %c0_0 = arith.constant 0 : index
    %0 = vector.load %arg0[%c0, %c0_0] : memref<8x768xf32, #tpu.memory_space<vmem>>, vector<8x768xf32>
    %c0_1 = arith.constant 0 : index
    %c0_2 = arith.constant 0 : index
    %1 = vector.load %arg1[%c0_1, %c0_2] : memref<1x768xf32, #tpu.memory_space<vmem>>, vector<1x768xf32>
    %c0_3 = arith.constant 0 : index
    %c0_4 = arith.constant 0 : index
    %2 = vector.load %arg2[%c0_3, %c0_4] : memref<8x8xf32, #tpu.memory_space<vmem>>, vector<8x8xf32>
    %cst = arith.constant dense<0.000000e+00> : vector<8x768xf32>
    %3 = tpu.matmul %2, %0, %cst {dimension_numbers = #tpu.dot_dimension_numbers<[1], [0], [0], [1], [0, 0, 1, 1], [], []>} : vector<8x8xf32>, vector<8x768xf32>, vector<8x768xf32> -> vector<8x768xf32>
    %4 = vector.broadcast %1 : vector<1x768xf32> to vector<8x768xf32>
    %5 = arith.mulf %3, %4 : vector<8x768xf32>
    %cst_5 = arith.constant dense<0.000000e+00> : vector<8xf32>
    %6 = vector.multi_reduction <add>, %5, %cst_5 [1] : vector<8x768xf32> to vector<8xf32>
    %7 = vector.shape_cast %6 : vector<8xf32> to vector<8x1xf32>
    %cst_6 = arith.constant 0.001953125 : f32
    %8 = vector.broadcast %cst_6 : f32 to vector<8x1xf32>
    %9 = arith.mulf %7, %8 : vector<8x1xf32>
    %10 = arith.mulf %5, %5 : vector<8x768xf32>
    %cst_7 = arith.constant dense<0.000000e+00> : vector<8xf32>
    %11 = vector.multi_reduction <add>, %10, %cst_7 [1] : vector<8x768xf32> to vector<8xf32>
    %12 = vector.shape_cast %11 : vector<8xf32> to vector<8x1xf32>
    %cst_8 = arith.constant 0.001953125 : f32
    %13 = vector.broadcast %cst_8 : f32 to vector<8x1xf32>
    %14 = arith.mulf %12, %13 : vector<8x1xf32>
    %15 = arith.mulf %9, %9 : vector<8x1xf32>
    %16 = arith.subf %14, %15 : vector<8x1xf32>
    %cst_9 = arith.constant 0.000000e+00 : f32
    %17 = vector.broadcast %cst_9 : f32 to vector<8x1xf32>
    %18 = arith.maximumf %16, %17 : vector<8x1xf32>
    %cst_10 = arith.constant 9.99999974E-6 : f32
    %19 = vector.broadcast %cst_10 : f32 to vector<8x1xf32>
    %20 = arith.addf %18, %19 : vector<8x1xf32>
    %21 = math.rsqrt %20 : vector<8x1xf32>
    %c0_11 = arith.constant 0 : index
    %c0_12 = arith.constant 0 : index
    %22 = vector.load %arg3[%c0_11, %c0_12] : memref<8x1xf32, #tpu.memory_space<vmem>>, vector<8x1xf32>
    %23 = arith.mulf %21, %22 : vector<8x1xf32>
    %c0_13 = arith.constant 0 : index
    %c0_14 = arith.constant 0 : index
    %24 = vector.load %arg4[%c0_13, %c0_14] : memref<8x1xf32, #tpu.memory_space<vmem>>, vector<8x1xf32>
    %25 = arith.mulf %9, %23 : vector<8x1xf32>
    %26 = arith.subf %24, %25 : vector<8x1xf32>
    %27 = vector.broadcast %23 : vector<8x1xf32> to vector<8x768xf32>
    %28 = arith.mulf %3, %27 : vector<8x768xf32>
    %29 = vector.broadcast %26 : vector<8x1xf32> to vector<8x768xf32>
    %30 = arith.addf %28, %29 : vector<8x768xf32>
    %cst_15 = arith.constant 0.000000e+00 : f32
    %31 = vector.broadcast %cst_15 : f32 to vector<8x768xf32>
    %32 = arith.maximumf %30, %31 : vector<8x768xf32>
    %33 = vector.broadcast %1 : vector<1x768xf32> to vector<8x768xf32>
    %34 = arith.mulf %32, %33 : vector<8x768xf32>
    %c19_i32 = arith.constant 19 : i32
    %35 = tpu.dynamic_rotate %34 by %c19_i32 dim 1 : vector<8x768xf32>, i32 -> vector<8x768xf32>
    %c18_i32 = arith.constant 18 : i32
    %36 = tpu.dynamic_rotate %34 by %c18_i32 dim 1 : vector<8x768xf32>, i32 -> vector<8x768xf32>
    %c17_i32 = arith.constant 17 : i32
    %37 = tpu.dynamic_rotate %34 by %c17_i32 dim 1 : vector<8x768xf32>, i32 -> vector<8x768xf32>
    %c1_i32 = arith.constant 1 : i32
    %38 = tpu.dynamic_rotate %34 by %c1_i32 dim 1 : vector<8x768xf32>, i32 -> vector<8x768xf32>
    %c767_i32 = arith.constant 767 : i32
    %39 = tpu.dynamic_rotate %34 by %c767_i32 dim 1 : vector<8x768xf32>, i32 -> vector<8x768xf32>
    %c751_i32 = arith.constant 751 : i32
    %40 = tpu.dynamic_rotate %34 by %c751_i32 dim 1 : vector<8x768xf32>, i32 -> vector<8x768xf32>
    %c750_i32 = arith.constant 750 : i32
    %41 = tpu.dynamic_rotate %34 by %c750_i32 dim 1 : vector<8x768xf32>, i32 -> vector<8x768xf32>
    %c749_i32 = arith.constant 749 : i32
    %42 = tpu.dynamic_rotate %34 by %c749_i32 dim 1 : vector<8x768xf32>, i32 -> vector<8x768xf32>
    %43 = tpu.concatenate %35, %36, %37, %38, %34, %39, %40, %41, %42 in 0 : vector<8x768xf32>, vector<8x768xf32>, vector<8x768xf32>, vector<8x768xf32>, vector<8x768xf32>, vector<8x768xf32>, vector<8x768xf32>, vector<8x768xf32>, vector<8x768xf32> -> vector<72x768xf32>
    %c0_16 = arith.constant 0 : index
    %c0_17 = arith.constant 0 : index
    %44 = vector.load %arg5[%c0_16, %c0_17] : memref<8x72xf32, #tpu.memory_space<vmem>>, vector<8x72xf32>
    %cst_18 = arith.constant dense<0.000000e+00> : vector<8x768xf32>
    %45 = tpu.matmul %44, %43, %cst_18 {dimension_numbers = #tpu.dot_dimension_numbers<[1], [0], [0], [1], [0, 0, 1, 1], [], []>} : vector<8x72xf32>, vector<72x768xf32>, vector<8x768xf32> -> vector<8x768xf32>
    %46 = vector.broadcast %1 : vector<1x768xf32> to vector<8x768xf32>
    %47 = arith.mulf %45, %46 : vector<8x768xf32>
    %cst_19 = arith.constant dense<0.000000e+00> : vector<8xf32>
    %48 = vector.multi_reduction <add>, %47, %cst_19 [1] : vector<8x768xf32> to vector<8xf32>
    %49 = vector.shape_cast %48 : vector<8xf32> to vector<8x1xf32>
    %cst_20 = arith.constant 0.001953125 : f32
    %50 = vector.broadcast %cst_20 : f32 to vector<8x1xf32>
    %51 = arith.mulf %49, %50 : vector<8x1xf32>
    %52 = arith.mulf %47, %47 : vector<8x768xf32>
    %cst_21 = arith.constant dense<0.000000e+00> : vector<8xf32>
    %53 = vector.multi_reduction <add>, %52, %cst_21 [1] : vector<8x768xf32> to vector<8xf32>
    %54 = vector.shape_cast %53 : vector<8xf32> to vector<8x1xf32>
    %cst_22 = arith.constant 0.001953125 : f32
    %55 = vector.broadcast %cst_22 : f32 to vector<8x1xf32>
    %56 = arith.mulf %54, %55 : vector<8x1xf32>
    %57 = arith.mulf %51, %51 : vector<8x1xf32>
    %58 = arith.subf %56, %57 : vector<8x1xf32>
    %cst_23 = arith.constant 0.000000e+00 : f32
    %59 = vector.broadcast %cst_23 : f32 to vector<8x1xf32>
    %60 = arith.maximumf %58, %59 : vector<8x1xf32>
    %cst_24 = arith.constant 9.99999974E-6 : f32
    %61 = vector.broadcast %cst_24 : f32 to vector<8x1xf32>
    %62 = arith.addf %60, %61 : vector<8x1xf32>
    %63 = math.rsqrt %62 : vector<8x1xf32>
    %c0_25 = arith.constant 0 : index
    %c0_26 = arith.constant 0 : index
    %64 = vector.load %arg6[%c0_25, %c0_26] : memref<8x1xf32, #tpu.memory_space<vmem>>, vector<8x1xf32>
    %65 = arith.mulf %63, %64 : vector<8x1xf32>
    %c0_27 = arith.constant 0 : index
    %c0_28 = arith.constant 0 : index
    %66 = vector.load %arg7[%c0_27, %c0_28] : memref<8x1xf32, #tpu.memory_space<vmem>>, vector<8x1xf32>
    %67 = arith.mulf %51, %65 : vector<8x1xf32>
    %68 = arith.subf %66, %67 : vector<8x1xf32>
    %69 = vector.broadcast %65 : vector<8x1xf32> to vector<8x768xf32>
    %70 = arith.mulf %45, %69 : vector<8x768xf32>
    %71 = vector.broadcast %68 : vector<8x1xf32> to vector<8x768xf32>
    %72 = arith.addf %70, %71 : vector<8x768xf32>
    %cst_29 = arith.constant 0.000000e+00 : f32
    %73 = vector.broadcast %cst_29 : f32 to vector<8x768xf32>
    %74 = arith.maximumf %72, %73 : vector<8x768xf32>
    %c0_30 = arith.constant 0 : index
    %c0_31 = arith.constant 0 : index
    %75 = vector.load %arg8[%c0_30, %c0_31] : memref<8x8xf32, #tpu.memory_space<vmem>>, vector<8x8xf32>
    %cst_32 = arith.constant dense<0.000000e+00> : vector<8x768xf32>
    %76 = tpu.matmul %75, %74, %cst_32 {dimension_numbers = #tpu.dot_dimension_numbers<[1], [0], [0], [1], [0, 0, 1, 1], [], []>} : vector<8x8xf32>, vector<8x768xf32>, vector<8x768xf32> -> vector<8x768xf32>
    %77 = vector.broadcast %1 : vector<1x768xf32> to vector<8x768xf32>
    %78 = arith.mulf %76, %77 : vector<8x768xf32>
    %cst_33 = arith.constant dense<0.000000e+00> : vector<8xf32>
    %79 = vector.multi_reduction <add>, %78, %cst_33 [1] : vector<8x768xf32> to vector<8xf32>
    %80 = vector.shape_cast %79 : vector<8xf32> to vector<8x1xf32>
    %cst_34 = arith.constant 0.001953125 : f32
    %81 = vector.broadcast %cst_34 : f32 to vector<8x1xf32>
    %82 = arith.mulf %80, %81 : vector<8x1xf32>
    %83 = arith.mulf %78, %78 : vector<8x768xf32>
    %cst_35 = arith.constant dense<0.000000e+00> : vector<8xf32>
    %84 = vector.multi_reduction <add>, %83, %cst_35 [1] : vector<8x768xf32> to vector<8xf32>
    %85 = vector.shape_cast %84 : vector<8xf32> to vector<8x1xf32>
    %cst_36 = arith.constant 0.001953125 : f32
    %86 = vector.broadcast %cst_36 : f32 to vector<8x1xf32>
    %87 = arith.mulf %85, %86 : vector<8x1xf32>
    %88 = arith.mulf %82, %82 : vector<8x1xf32>
    %89 = arith.subf %87, %88 : vector<8x1xf32>
    %cst_37 = arith.constant 0.000000e+00 : f32
    %90 = vector.broadcast %cst_37 : f32 to vector<8x1xf32>
    %91 = arith.maximumf %89, %90 : vector<8x1xf32>
    %cst_38 = arith.constant 9.99999974E-6 : f32
    %92 = vector.broadcast %cst_38 : f32 to vector<8x1xf32>
    %93 = arith.addf %91, %92 : vector<8x1xf32>
    %94 = math.rsqrt %93 : vector<8x1xf32>
    %c0_39 = arith.constant 0 : index
    %c0_40 = arith.constant 0 : index
    %95 = vector.load %arg9[%c0_39, %c0_40] : memref<8x1xf32, #tpu.memory_space<vmem>>, vector<8x1xf32>
    %96 = arith.mulf %94, %95 : vector<8x1xf32>
    %c0_41 = arith.constant 0 : index
    %c0_42 = arith.constant 0 : index
    %97 = vector.load %arg10[%c0_41, %c0_42] : memref<8x1xf32, #tpu.memory_space<vmem>>, vector<8x1xf32>
    %98 = arith.mulf %82, %96 : vector<8x1xf32>
    %99 = arith.subf %97, %98 : vector<8x1xf32>
    %100 = vector.broadcast %96 : vector<8x1xf32> to vector<8x768xf32>
    %101 = arith.mulf %76, %100 : vector<8x768xf32>
    %102 = vector.broadcast %99 : vector<8x1xf32> to vector<8x768xf32>
    %103 = arith.addf %101, %102 : vector<8x768xf32>
    %104 = arith.addf %103, %0 : vector<8x768xf32>
    %cst_43 = arith.constant 0.000000e+00 : f32
    %105 = vector.broadcast %cst_43 : f32 to vector<8x768xf32>
    %106 = arith.maximumf %104, %105 : vector<8x768xf32>
    %c0_44 = arith.constant 0 : index
    %c0_45 = arith.constant 0 : index
    %107 = vector.load %arg11[%c0_44, %c0_45] : memref<8x768xf32, #tpu.memory_space<vmem>>, vector<8x768xf32>
    tpu.vector_store %arg11[%c0_44, %c0_45], %106 {strides = array<i32>} : memref<8x768xf32, #tpu.memory_space<vmem>>, vector<8x768xf32>,
    return
  }
}

</mosaic_0001>

<llo_original>
// kernel: tpu_custom_call.1
$region0: #{tpu_custom_call.1}
  #allocation0 [shape = 'u32[]', space=smem, size = 0x4, offset = 0x4, fixed_abs, tag = 'smem constant byte address 0x4 - core index']
  #allocation1 [shape = 'u32[144,128]{1,0:T(1,128)}', space=vmem, size = 0x12000, scoped, tag = 'internal scratch']
  %s0 = inlined_call_operand.vmem [shape: f32[8,768], index: 0, kind: input, shape index: {}]
  %s1 = inlined_call_operand.hbm [shape: f32[1,768], index: 1, kind: input, shape index: {}]
  %s2 = inlined_call_operand.vmem [shape: f32[8,8], index: 2, kind: input, shape index: {}]
  %s3 = inlined_call_operand.vmem [shape: f32[8,1], index: 3, kind: input, shape index: {}]
  %s4 = inlined_call_operand.vmem [shape: f32[8,1], index: 4, kind: input, shape index: {}]
  %s5 = inlined_call_operand.vmem [shape: f32[8,72], index: 5, kind: input, shape index: {}]
  %s6 = inlined_call_operand.vmem [shape: f32[8,1], index: 6, kind: input, shape index: {}]
  %s7 = inlined_call_operand.vmem [shape: f32[8,1], index: 7, kind: input, shape index: {}]
  %s8 = inlined_call_operand.vmem [shape: f32[8,8], index: 8, kind: input, shape index: {}]
  %s9 = inlined_call_operand.vmem [shape: f32[8,1], index: 9, kind: input, shape index: {}]
  %s10 = inlined_call_operand.vmem [shape: f32[8,1], index: 10, kind: input, shape index: {}]
  %s11 = inlined_call_operand.hbm [shape: f32[8,768], index: 11, kind: output, shape index: {}]
  %s12 = sld [smem:[#allocation0]]
  $region58: #{tpu_custom_call.1} parent=0
    _
  %s14 = ssub.s32 1, %s12
  %s15 = scalar_select 0, %s14, %s12
  $region1: #{tpu_custom_call.1} parent=0
    #allocation2 [shape = 'u8[3072]{0}', space=vmem, size = 0xc00, scoped, tag = 'input window, operand 1, single buffered']
    #allocation3 [shape = 's32[1]{0}', space=sflag, size = 0x4, scoped, tag = 'scoped memory for tpu_custom_call.1']
    #allocation4 [shape = 's32[1]{0}', space=sflag, size = 0x4, scoped, tag = 'scoped memory for tpu_custom_call.1']
    #allocation5 [shape = 'u8[24576]{0}', space=vmem, size = 0x6000, scoped, tag = 'output window, operand 0, single buffered']
    %16 = vsyncpa [#allocation3], 0
    %17 = vsyncpa [#allocation4], 0
    // Predicated region
    $region2: #{tpu_custom_call.1} parent=1 // pred_check
      _
    $region3: #{tpu_custom_call.1} parent=1 // pred_check_branch
      %19 = sbr.rel (0) target = $region5
    $region4: #{tpu_custom_call.1} parent=1 // pred_region
      _
    $region5: #{tpu_custom_call.1} parent=1 // pred_fallthru
      _
    // Predicated region
    $region6: #{tpu_custom_call.1} parent=1 // pred_check
      _
    $region7: #{tpu_custom_call.1} parent=1 // pred_check_branch
      %21 = sbr.rel (0) target = $region9
    $region8: #{tpu_custom_call.1} parent=1 // pred_region
      %s23 = ssub.s32 96, 96
      %24 = vsyncadd [#allocation3], %s23
      %s26 = sshll.u32 [#allocation2], 4
      %s27 = int_to_ptr.vmem [resolvable:$true] %s26
      %29 = dma.hbm_to_vmem [thread:$0]  %s1, 96, %s27, [#allocation3]
    $region9: #{tpu_custom_call.1} parent=1 // pred_fallthru
      _
    // Predicated region
    $region10: #{tpu_custom_call.1} parent=1 // pred_check
      _
    $region11: #{tpu_custom_call.1} parent=1 // pred_check_branch
      %31 = sbr.rel (0) target = $region13
    $region12: #{tpu_custom_call.1} parent=1 // pred_region
      _
    $region13: #{tpu_custom_call.1} parent=1 // pred_fallthru
      _
    // Predicated region
    $region14: #{tpu_custom_call.1} parent=1 // pred_check
      _
    $region15: #{tpu_custom_call.1} parent=1 // pred_check_branch
      %33 = sbr.rel (0) target = $region17
    $region16: #{tpu_custom_call.1} parent=1 // pred_region
      _
    $region17: #{tpu_custom_call.1} parent=1 // pred_fallthru
      _
    // Predicated region
    $region18: #{tpu_custom_call.1} parent=1 // pred_check
      _
    $region19: #{tpu_custom_call.1} parent=1 // pred_check_branch
      %35 = sbr.rel (0) target = $region21
    $region20: #{tpu_custom_call.1} parent=1 // pred_region
      _
    $region21: #{tpu_custom_call.1} parent=1 // pred_fallthru
      _
    // Predicated region
    $region22: #{tpu_custom_call.1} parent=1 // pred_check
      _
    $region23: #{tpu_custom_call.1} parent=1 // pred_check_branch
      %37 = sbr.rel (0) target = $region25
    $region24: #{tpu_custom_call.1} parent=1 // pred_region
      _
    $region25: #{tpu_custom_call.1} parent=1 // pred_fallthru
      _
    // Predicated region
    $region26: #{tpu_custom_call.1} parent=1 // pred_check
      _
    $region27: #{tpu_custom_call.1} parent=1 // pred_check_branch
      %39 = sbr.rel (0) target = $region29
    $region28: #{tpu_custom_call.1} parent=1 // pred_region
      _
    $region29: #{tpu_custom_call.1} parent=1 // pred_fallthru
      _
    // Predicated region
    $region30: #{tpu_custom_call.1} parent=1 // pred_check
      _
    $region31: #{tpu_custom_call.1} parent=1 // pred_check_branch
      %41 = sbr.rel (0) target = $region33
    $region32: #{tpu_custom_call.1} parent=1 // pred_region
      _
    $region33: #{tpu_custom_call.1} parent=1 // pred_fallthru
      _
    // Predicated region
    $region34: #{tpu_custom_call.1} parent=1 // pred_check
      _
    $region35: #{tpu_custom_call.1} parent=1 // pred_check_branch
      %43 = sbr.rel (0) target = $region37
    $region36: #{tpu_custom_call.1} parent=1 // pred_region
      _
    $region37: #{tpu_custom_call.1} parent=1 // pred_fallthru
      _
    // Predicated region
    $region38: #{tpu_custom_call.1} parent=1 // pred_check
      _
    $region39: #{tpu_custom_call.1} parent=1 // pred_check_branch
      %45 = sbr.rel (0) target = $region41
    $region40: #{tpu_custom_call.1} parent=1 // pred_region
      _
    $region41: #{tpu_custom_call.1} parent=1 // pred_fallthru
      _
    // Predicated region
    $region42: #{tpu_custom_call.1} parent=1 // pred_check
      _
    $region43: #{tpu_custom_call.1} parent=1 // pred_check_branch
      %47 = sbr.rel (0) target = $region45
    $region44: #{tpu_custom_call.1} parent=1 // pred_region
      _
    $region45: #{tpu_custom_call.1} parent=1 // pred_fallthru
      _
    // Predicated region
    $region46: #{tpu_custom_call.1} parent=1 // pred_check
      _
    $region47: #{tpu_custom_call.1} parent=1 // pred_check_branch
      %49 = sbr.rel (0) target = $region49
    $region48: #{tpu_custom_call.1} parent=1 // pred_region
      %50 = dma.done [#allocation3], 96
    $region49: #{tpu_custom_call.1} parent=1 // pred_fallthru
      _
    %v51 = vld [vmem:[%s0] sm:$0xff]
    %v52 = vld [vmem:[%s0 + $0x8] sm:$0xff]
    %v53 = vld [vmem:[%s0 + $0x10] sm:$0xff]
    %v54 = vld [vmem:[%s0 + $0x18] sm:$0xff]
    %v55 = vld [vmem:[%s0 + $0x20] sm:$0xff]
    %v56 = vld [vmem:[%s0 + $0x28] sm:$0xff]
    %v57 = vld [vmem:[#allocation2] sm:$0x3f]
    %v58 = vld [vmem:[%s2] sm:$0xff]
    %vm59 = vcmask 64512
    %v61 = vsel %vm59, %v58, 0
    %63 = vmatprep.subr.mxu0 %v52
    %64 = vmatpush1.msra.mxu0 %v51
    %65 = vmatprep.subr.mxu0 0.0
    %66 = vmatpush1.msra.mxu0 0.0
    %67 = vmatprep.subr.mxu0 0.0
    %68 = vmatpush1.msra.mxu0 0.0
    %69 = vmatprep.subr.mxu0 0.0
    %70 = vmatpush1.msra.mxu0 0.0
    %71 = vmatprep.subr.mxu0 0.0
    %72 = vmatpush1.msra.mxu0 0.0
    %73 = vmatprep.subr.mxu0 0.0
    %74 = vmatpush1.msra.mxu0 0.0
    %75 = vmatprep.subr.mxu0 0.0
    %76 = vmatpush1.msra.mxu0 0.0
    %77 = vmatprep.subr.mxu0 0.0
    %78 = vmatpush1.msra.mxu0 0.0
    %79 = vmatprep.subr.mxu0 0.0
    %80 = vmatpush1.msra.mxu0 0.0
    %81 = vmatprep.subr.mxu0 0.0
    %82 = vmatpush1.msra.mxu0 0.0
    %83 = vmatprep.subr.mxu0 0.0
    %84 = vmatpush1.msra.mxu0 0.0
    %85 = vmatprep.subr.mxu0 0.0
    %86 = vmatpush1.msra.mxu0 0.0
    %87 = vmatprep.subr.mxu0 0.0
    %88 = vmatpush1.msra.mxu0 0.0
    %89 = vmatprep.subr.mxu0 0.0
    %90 = vmatpush1.msra.mxu0 0.0
    %91 = vmatprep.subr.mxu0 0.0
    %92 = vmatpush1.msra.mxu0 0.0
    %93 = vmatprep.subr.mxu0 0.0
    %94 = vmatpush1.msra.mxu0 0.0
    %95 = vmatprep.subr.mxu0 0.0
    %96 = vmatpush1.msra.mxu0 0.0
    %97 = vmatprep.subr.mxu0 0.0
    %98 = vmatpush1.msra.mxu0 0.0
    %99 = vmatprep.subr.mxu0 0.0
    %100 = vmatpush1.msra.mxu0 0.0
    %101 = vmatprep.subr.mxu0 0.0
    %102 = vmatpush1.msra.mxu0 0.0
    %103 = vmatprep.subr.mxu0 0.0
    %104 = vmatpush1.msra.mxu0 0.0
    %105 = vmatprep.subr.mxu0 0.0
    %106 = vmatpush1.msra.mxu0 0.0
    %107 = vmatprep.subr.mxu0 0.0
    %108 = vmatpush1.msra.mxu0 0.0
    %109 = vmatprep.subr.mxu0 0.0
    %110 = vmatpush1.msra.mxu0 0.0
    %111 = vmatprep.subr.mxu0 0.0
    %112 = vmatpush1.msra.mxu0 0.0
    %113 = vmatprep.subr.mxu0 0.0
    %114 = vmatpush1.msra.mxu0 0.0
    %115 = vmatprep.subr.mxu0 0.0
    %116 = vmatpush1.msra.mxu0 0.0
    %117 = vmatprep.subr.mxu0 0.0
    %118 = vmatpush1.msra.mxu0 0.0
    %119 = vmatprep.subr.mxu0 0.0
    %120 = vmatpush1.msra.mxu0 0.0
    %121 = vmatprep.subr.mxu0 0.0
    %122 = vmatpush1.msra.mxu0 0.0
    %123 = vmatprep.subr.mxu0 0.0
    %124 = vmatpush1.msra.mxu0 0.0
    %125 = vmatprep.subr.mxu0 0.0
    %126 = vmatpush1.msra.mxu0 0.0
    %127 = vmatprep.mubr.f32.mxu0 0.0
    %128 = vmatmul.mubr.f32.gmra.mrb[0].mxu0 %v61
    %v129 = vpop.f32.mrb[0].mxu0
    %v130 = vadd.f32 0.0, %v129
    %v131 = vpop.f32.mrb[0].mxu0
    %v132 = vadd.f32 0.0, %v131
    %133 = vdwg.mxu0
    %134 = vmatprep.subr.mxu0 %v54
    %135 = vmatpush1.msra.mxu0 %v53
    %136 = vmatprep.subr.mxu0 0.0
    %137 = vmatpush1.msra.mxu0 0.0
    %138 = vmatprep.subr.mxu0 0.0
    %139 = vmatpush1.msra.mxu0 0.0
    %140 = vmatprep.subr.mxu0 0.0
    %141 = vmatpush1.msra.mxu0 0.0
    %142 = vmatprep.subr.mxu0 0.0
    %143 = vmatpush1.msra.mxu0 0.0
    %144 = vmatprep.subr.mxu0 0.0
    %145 = vmatpush1.msra.mxu0 0.0
    %146 = vmatprep.subr.mxu0 0.0
    %147 = vmatpush1.msra.mxu0 0.0
    %148 = vmatprep.subr.mxu0 0.0
    %149 = vmatpush1.msra.mxu0 0.0
    %150 = vmatprep.subr.mxu0 0.0
    %151 = vmatpush1.msra.mxu0 0.0
    %152 = vmatprep.subr.mxu0 0.0
    %153 = vmatpush1.msra.mxu0 0.0
    %154 = vmatprep.subr.mxu0 0.0
    %155 = vmatpush1.msra.mxu0 0.0
    %156 = vmatprep.subr.mxu0 0.0
    %157 = vmatpush1.msra.mxu0 0.0
    %158 = vmatprep.subr.mxu0 0.0
    %159 = vmatpush1.msra.mxu0 0.0
    %160 = vmatprep.subr.mxu0 0.0
    %161 = vmatpush1.msra.mxu0 0.0
    %162 = vmatprep.subr.mxu0 0.0
    %163 = vmatpush1.msra.mxu0 0.0
    %164 = vmatprep.subr.mxu0 0.0
    %165 = vmatpush1.msra.mxu0 0.0
    %166 = vmatprep.subr.mxu0 0.0
    %167 = vmatpush1.msra.mxu0 0.0
    %168 = vmatprep.subr.mxu0 0.0
    %169 = vmatpush1.msra.mxu0 0.0
    %170 = vmatprep.subr.mxu0 0.0
    %171 = vmatpush1.msra.mxu0 0.0
    %172 = vmatprep.subr.mxu0 0.0
    %173 = vmatpush1.msra.mxu0 0.0
    %174 = vmatprep.subr.mxu0 0.0
    %175 = vmatpush1.msra.mxu0 0.0
    %176 = vmatprep.subr.mxu0 0.0
    %177 = vmatpush1.msra.mxu0 0.0
    %178 = vmatprep.subr.mxu0 0.0
    %179 = vmatpush1.msra.mxu0 0.0
    %180 = vmatprep.subr.mxu0 0.0
    %181 = vmatpush1.msra.mxu0 0.0
    %182 = vmatprep.subr.mxu0 0.0
    %183 = vmatpush1.msra.mxu0 0.0
    %184 = vmatprep.subr.mxu0 0.0
    %185 = vmatpush1.msra.mxu0 0.0
    %186 = vmatprep.subr.mxu0 0.0
    %187 = vmatpush1.msra.mxu0 0.0
    %188 = vmatprep.subr.mxu0 0.0
    %189 = vmatpush1.msra.mxu0 0.0
    %190 = vmatprep.subr.mxu0 0.0
    %191 = vmatpush1.msra.mxu0 0.0
    %192 = vmatprep.subr.mxu0 0.0
    %193 = vmatpush1.msra.mxu0 0.0
    %194 = vmatprep.subr.mxu0 0.0
    %195 = vmatpush1.msra.mxu0 0.0
    %196 = vmatprep.subr.mxu0 0.0
    %197 = vmatpush1.msra.mxu0 0.0
    %198 = vmatprep.mubr.f32.mxu0 0.0
    %199 = vmatmul.mubr.f32.gmra.mrb[0].mxu0 %v61
    %v200 = vpop.f32.mrb[0].mxu0
    %v201 = vadd.f32 0.0, %v200
    %v202 = vpop.f32.mrb[0].mxu0
    %v203 = vadd.f32 0.0, %v202
    %204 = vdwg.mxu0
    %205 = vmatprep.subr.mxu0 %v56
    %206 = vmatpush1.msra.mxu0 %v55
    %207 = vmatprep.subr.mxu0 0.0
    %208 = vmatpush1.msra.mxu0 0.0
    %209 = vmatprep.subr.mxu0 0.0
    %210 = vmatpush1.msra.mxu0 0.0
    %211 = vmatprep.subr.mxu0 0.0
    %212 = vmatpush1.msra.mxu0 0.0
    %213 = vmatprep.subr.mxu0 0.0
    %214 = vmatpush1.msra.mxu0 0.0
    %215 = vmatprep.subr.mxu0 0.0
    %216 = vmatpush1.msra.mxu0 0.0
    %217 = vmatprep.subr.mxu0 0.0
    %218 = vmatpush1.msra.mxu0 0.0
    %219 = vmatprep.subr.mxu0 0.0
    %220 = vmatpush1.msra.mxu0 0.0
    %221 = vmatprep.subr.mxu0 0.0
    %222 = vmatpush1.msra.mxu0 0.0
    %223 = vmatprep.subr.mxu0 0.0
    %224 = vmatpush1.msra.mxu0 0.0
    %225 = vmatprep.subr.mxu0 0.0
    %226 = vmatpush1.msra.mxu0 0.0
    %227 = vmatprep.subr.mxu0 0.0
    %228 = vmatpush1.msra.mxu0 0.0
    %229 = vmatprep.subr.mxu0 0.0
    %230 = vmatpush1.msra.mxu0 0.0
    %231 = vmatprep.subr.mxu0 0.0
    %232 = vmatpush1.msra.mxu0 0.0
    %233 = vmatprep.subr.mxu0 0.0
    %234 = vmatpush1.msra.mxu0 0.0
    %235 = vmatprep.subr.mxu0 0.0
    %236 = vmatpush1.msra.mxu0 0.0
    %237 = vmatprep.subr.mxu0 0.0
    %238 = vmatpush1.msra.mxu0 0.0
    %239 = vmatprep.subr.mxu0 0.0
    %240 = vmatpush1.msra.mxu0 0.0
    %241 = vmatprep.subr.mxu0 0.0
    %242 = vmatpush1.msra.mxu0 0.0
    %243 = vmatprep.subr.mxu0 0.0
    %244 = vmatpush1.msra.mxu0 0.0
    %245 = vmatprep.subr.mxu0 0.0
    %246 = vmatpush1.msra.mxu0 0.0
    %247 = vmatprep.subr.mxu0 0.0
    %248 = vmatpush1.msra.mxu0 0.0
    %249 = vmatprep.subr.mxu0 0.0
    %250 = vmatpush1.msra.mxu0 0.0
    %251 = vmatprep.subr.mxu0 0.0
    %252 = vmatpush1.msra.mxu0 0.0
    %253 = vmatprep.subr.mxu0 0.0
    %254 = vmatpush1.msra.mxu0 0.0
    %255 = vmatprep.subr.mxu0 0.0
    %256 = vmatpush1.msra.mxu0 0.0
    %257 = vmatprep.subr.mxu0 0.0
    %258 = vmatpush1.msra.mxu0 0.0
    %259 = vmatprep.subr.mxu0 0.0
    %260 = vmatpush1.msra.mxu0 0.0
    %261 = vmatprep.subr.mxu0 0.0
    %262 = vmatpush1.msra.mxu0 0.0
    %263 = vmatprep.subr.mxu0 0.0
    %264 = vmatpush1.msra.mxu0 0.0
    %265 = vmatprep.subr.mxu0 0.0
    %266 = vmatpush1.msra.mxu0 0.0
    %267 = vmatprep.subr.mxu0 0.0
    %268 = vmatpush1.msra.mxu0 0.0
    %269 = vmatprep.mubr.f32.mxu0 0.0
    %270 = vmatmul.mubr.f32.gmra.mrb[0].mxu0 %v61
    %v271 = vpop.f32.mrb[0].mxu0
    %v272 = vadd.f32 0.0, %v271
    %v273 = vpop.f32.mrb[0].mxu0
    %v274 = vadd.f32 0.0, %v273
    %275 = vdwg.mxu0
    %v277 = vlaneseq
    %v278 = vshrl.u32 %v277, 7
    %v279 = vsub.s32 0, %v278
    %v280 = vrot.slane %v57, %v279
    %v281 = vlaneseq
    %v282 = vshrl.u32 %v281, 7
    %v283 = vsub.s32 1, %v282
    %v284 = vrot.slane %v57, %v283
    %v285 = vlaneseq
    %v286 = vshrl.u32 %v285, 7
    %v287 = vsub.s32 2, %v286
    %v288 = vrot.slane %v57, %v287
    %v289 = vlaneseq
    %v290 = vshrl.u32 %v289, 7
    %v291 = vsub.s32 3, %v290
    %v292 = vrot.slane %v57, %v291
    %v293 = vlaneseq
    %v294 = vshrl.u32 %v293, 7
    %v295 = vsub.s32 4, %v294
    %v296 = vrot.slane %v57, %v295
    %v297 = vlaneseq
    %v298 = vshrl.u32 %v297, 7
    %v299 = vsub.s32 5, %v298
    %v300 = vrot.slane %v57, %v299
    %v307 = vmul.f32 %v130, %v280
    %v308 = vmul.f32 %v132, %v284
    %v309 = vmul.f32 %v201, %v288
    %v310 = vmul.f32 %v203, %v292
    %v311 = vmul.f32 %v272, %v296
    %v312 = vmul.f32 %v274, %v300
    %v313 = vadd.f32 %v307, %v308
    %v314 = vadd.f32 %v313, %v309
    %v315 = vadd.f32 %v314, %v310
    %v316 = vadd.f32 %v315, %v311
    %v317 = vadd.f32 %v316, %v312
    %318 = vadd.xlane.f32.xlu0 %v317
    %v319 = vpop.xlane.xlu0 %318
    %v320 = vmul.f32 %v319, 0.001953125
    %v321 = vmul.f32 %v307, %v307
    %v322 = vmul.f32 %v308, %v308
    %v323 = vmul.f32 %v309, %v309
    %v324 = vmul.f32 %v310, %v310
    %v325 = vmul.f32 %v311, %v311
    %v326 = vmul.f32 %v312, %v312
    %v327 = vadd.f32 %v321, %v322
    %v328 = vadd.f32 %v327, %v323
    %v329 = vadd.f32 %v328, %v324
    %v330 = vadd.f32 %v329, %v325
    %v331 = vadd.f32 %v330, %v326
    %332 = vadd.xlane.f32.xlu0 %v331
    %v333 = vpop.xlane.xlu0 %332
    %v334 = vmul.f32 %v333, 0.001953125
    %v335 = vmul.f32 %v320, %v320
    %v336 = vsub.f32 %v334, %v335
    %v337 = vmax.f32 %v336, 0.0
    %v338 = vadd.f32 %v337, 1e-05
    %v339 = vrsqrt.pop %v338
    %v340 = vld [vmem:[%s3] sm:$0xff]
    %v341 = vmul.f32 %v339, %v340
    %v342 = vld [vmem:[%s4] sm:$0xff]
    %v343 = vmul.f32 %v320, %v341
    %v344 = vsub.f32 %v342, %v343
    %346 = vset.pattern.permute.xlu0 0
    %347 = vperm.xlu0 %346, %v341
    %v348 = vpop.permute.xlu0 %347
    %v350 = vmul.f32 %v130, %v348
    %v351 = vmul.f32 %v132, %v348
    %v352 = vmul.f32 %v201, %v348
    %v353 = vmul.f32 %v203, %v348
    %v354 = vmul.f32 %v272, %v348
    %v355 = vmul.f32 %v274, %v348
    %357 = vset.pattern.permute.xlu0 0
    %358 = vperm.xlu0 %357, %v344
    %v359 = vpop.permute.xlu0 %358
    %v361 = vadd.f32 %v350, %v359
    %v362 = vadd.f32 %v351, %v359
    %v363 = vadd.f32 %v352, %v359
    %v364 = vadd.f32 %v353, %v359
    %v365 = vadd.f32 %v354, %v359
    %v366 = vadd.f32 %v355, %v359
    %v367 = vmax.f32 %v361, 0.0
    %v368 = vmax.f32 %v362, 0.0
    %v369 = vmax.f32 %v363, 0.0
    %v370 = vmax.f32 %v364, 0.0
    %v371 = vmax.f32 %v365, 0.0
    %v372 = vmax.f32 %v366, 0.0
    %v373 = vmul.f32 %v367, %v280
    %v374 = vmul.f32 %v368, %v284
    %v375 = vmul.f32 %v369, %v288
    %v376 = vmul.f32 %v370, %v292
    %v377 = vmul.f32 %v371, %v296
    %v378 = vmul.f32 %v372, %v300
    %379 = vrot.lane.b32.xlu0 %v373, 19
    %v380 = vpop.permute.xlu0 %379
    %381 = vrot.lane.b32.xlu0 %v374, 19
    %v382 = vpop.permute.xlu0 %381
    %383 = vrot.lane.b32.xlu0 %v375, 19
    %v384 = vpop.permute.xlu0 %383
    %385 = vrot.lane.b32.xlu0 %v376, 19
    %v386 = vpop.permute.xlu0 %385
    %387 = vrot.lane.b32.xlu0 %v377, 19
    %v388 = vpop.permute.xlu0 %387
    %389 = vrot.lane.b32.xlu0 %v378, 19
    %v390 = vpop.permute.xlu0 %389
    %v391 = vlaneseq
    %v392 = vand.u32 %v391, 127
    %vm393 = vcmp.lt.s32.totalorder %v392, 19
    %v394 = vsel %vm393, %v388, %v390
    %v395 = vsel %vm393, %v386, %v388
    %v396 = vsel %vm393, %v384, %v386
    %v397 = vsel %vm393, %v382, %v384
    %v398 = vsel %vm393, %v380, %v382
    %v399 = vsel %vm393, %v390, %v380
    %400 = vrot.lane.b32.xlu0 %v373, 18
    %v401 = vpop.permute.xlu0 %400
    %402 = vrot.lane.b32.xlu0 %v374, 18
    %v403 = vpop.permute.xlu0 %402
    %404 = vrot.lane.b32.xlu0 %v375, 18
    %v405 = vpop.permute.xlu0 %404
    %406 = vrot.lane.b32.xlu0 %v376, 18
    %v407 = vpop.permute.xlu0 %406
    %408 = vrot.lane.b32.xlu0 %v377, 18
    %v409 = vpop.permute.xlu0 %408
    %410 = vrot.lane.b32.xlu0 %v378, 18
    %v411 = vpop.permute.xlu0 %410
    %vm412 = vcmp.lt.s32.totalorder %v392, 18
    %v413 = vsel %vm412, %v409, %v411
    %v414 = vsel %vm412, %v407, %v409
    %v415 = vsel %vm412, %v405, %v407
    %v416 = vsel %vm412, %v403, %v405
    %v417 = vsel %vm412, %v401, %v403
    %v418 = vsel %vm412, %v411, %v401
    %419 = vrot.lane.b32.xlu0 %v373, 17
    %v420 = vpop.permute.xlu0 %419
    %421 = vrot.lane.b32.xlu0 %v374, 17
    %v422 = vpop.permute.xlu0 %421
    %423 = vrot.lane.b32.xlu0 %v375, 17
    %v424 = vpop.permute.xlu0 %423
    %425 = vrot.lane.b32.xlu0 %v376, 17
    %v426 = vpop.permute.xlu0 %425
    %427 = vrot.lane.b32.xlu0 %v377, 17
    %v428 = vpop.permute.xlu0 %427
    %429 = vrot.lane.b32.xlu0 %v378, 17
    %v430 = vpop.permute.xlu0 %429
    %vm431 = vcmp.lt.s32.totalorder %v392, 17
    %v432 = vsel %vm431, %v428, %v430
    %v433 = vsel %vm431, %v426, %v428
    %v434 = vsel %vm431, %v424, %v426
    %v435 = vsel %vm431, %v422, %v424
    %v436 = vsel %vm431, %v420, %v422
    %v437 = vsel %vm431, %v430, %v420
    %438 = vrot.lane.b32.xlu0 %v373, 1
    %v439 = vpop.permute.xlu0 %438
    %440 = vrot.lane.b32.xlu0 %v374, 1
    %v441 = vpop.permute.xlu0 %440
    %442 = vrot.lane.b32.xlu0 %v375, 1
    %v443 = vpop.permute.xlu0 %442
    %444 = vrot.lane.b32.xlu0 %v376, 1
    %v445 = vpop.permute.xlu0 %444
    %446 = vrot.lane.b32.xlu0 %v377, 1
    %v447 = vpop.permute.xlu0 %446
    %448 = vrot.lane.b32.xlu0 %v378, 1
    %v449 = vpop.permute.xlu0 %448
    %vm450 = vcmp.lt.s32.totalorder %v392, 1
    %v451 = vsel %vm450, %v447, %v449
    %v452 = vsel %vm450, %v445, %v447
    %v453 = vsel %vm450, %v443, %v445
    %v454 = vsel %vm450, %v441, %v443
    %v455 = vsel %vm450, %v439, %v441
    %v456 = vsel %vm450, %v449, %v439
    %457 = vrot.lane.b32.xlu0 %v373, 127
    %v458 = vpop.permute.xlu0 %457
    %459 = vrot.lane.b32.xlu0 %v374, 127
    %v460 = vpop.permute.xlu0 %459
    %461 = vrot.lane.b32.xlu0 %v375, 127
    %v462 = vpop.permute.xlu0 %461
    %463 = vrot.lane.b32.xlu0 %v376, 127
    %v464 = vpop.permute.xlu0 %463
    %465 = vrot.lane.b32.xlu0 %v377, 127
    %v466 = vpop.permute.xlu0 %465
    %467 = vrot.lane.b32.xlu0 %v378, 127
    %v468 = vpop.permute.xlu0 %467
    %vm469 = vcmp.lt.s32.totalorder %v392, 127
    %v470 = vsel %vm469, %v466, %v468
    %v471 = vsel %vm469, %v464, %v466
    %v472 = vsel %vm469, %v462, %v464
    %v473 = vsel %vm469, %v460, %v462
    %v474 = vsel %vm469, %v458, %v460
    %v475 = vsel %vm469, %v468, %v458
    %476 = vrot.lane.b32.xlu0 %v373, 111
    %v477 = vpop.permute.xlu0 %476
    %478 = vrot.lane.b32.xlu0 %v374, 111
    %v479 = vpop.permute.xlu0 %478
    %480 = vrot.lane.b32.xlu0 %v375, 111
    %v481 = vpop.permute.xlu0 %480
    %482 = vrot.lane.b32.xlu0 %v376, 111
    %v483 = vpop.permute.xlu0 %482
    %484 = vrot.lane.b32.xlu0 %v377, 111
    %v485 = vpop.permute.xlu0 %484
    %486 = vrot.lane.b32.xlu0 %v378, 111
    %v487 = vpop.permute.xlu0 %486
    %vm488 = vcmp.lt.s32.totalorder %v392, 111
    %v489 = vsel %vm488, %v485, %v487
    %v490 = vsel %vm488, %v483, %v485
    %v491 = vsel %vm488, %v481, %v483
    %v492 = vsel %vm488, %v479, %v481
    %v493 = vsel %vm488, %v477, %v479
    %v494 = vsel %vm488, %v487, %v477
    %495 = vrot.lane.b32.xlu0 %v373, 110
    %v496 = vpop.permute.xlu0 %495
    %497 = vrot.lane.b32.xlu0 %v374, 110
    %v498 = vpop.permute.xlu0 %497
    %499 = vrot.lane.b32.xlu0 %v375, 110
    %v500 = vpop.permute.xlu0 %499
    %501 = vrot.lane.b32.xlu0 %v376, 110
    %v502 = vpop.permute.xlu0 %501
    %503 = vrot.lane.b32.xlu0 %v377, 110
    %v504 = vpop.permute.xlu0 %503
    %505 = vrot.lane.b32.xlu0 %v378, 110
    %v506 = vpop.permute.xlu0 %505
    %vm507 = vcmp.lt.s32.totalorder %v392, 110
    %v508 = vsel %vm507, %v504, %v506
    %v509 = vsel %vm507, %v502, %v504
    %v510 = vsel %vm507, %v500, %v502
    %v511 = vsel %vm507, %v498, %v500
    %v512 = vsel %vm507, %v496, %v498
    %v513 = vsel %vm507, %v506, %v496
    %514 = vrot.lane.b32.xlu0 %v373, 109
    %v515 = vpop.permute.xlu0 %514
    %516 = vrot.lane.b32.xlu0 %v374, 109
    %v517 = vpop.permute.xlu0 %516
    %518 = vrot.lane.b32.xlu0 %v375, 109
    %v519 = vpop.permute.xlu0 %518
    %520 = vrot.lane.b32.xlu0 %v376, 109
    %v521 = vpop.permute.xlu0 %520
    %522 = vrot.lane.b32.xlu0 %v377, 109
    %v523 = vpop.permute.xlu0 %522
    %524 = vrot.lane.b32.xlu0 %v378, 109
    %v525 = vpop.permute.xlu0 %524
    %vm526 = vcmp.lt.s32.totalorder %v392, 109
    %v527 = vsel %vm526, %v523, %v525
    %v528 = vsel %vm526, %v521, %v523
    %v529 = vsel %vm526, %v519, %v521
    %v530 = vsel %vm526, %v517, %v519
    %v531 = vsel %vm526, %v515, %v517
    %v532 = vsel %vm526, %v525, %v515
    %v533 = vld [vmem:[%s5] sm:$0xff]
    %vm534 = vcmask 588800
    %v536 = vsel %vm534, %v533, 0
    %538 = vmatprep.subr.mxu0 %v398
    %539 = vmatpush1.msra.mxu0 %v399
    %540 = vmatprep.subr.mxu0 %v417
    %541 = vmatpush1.msra.mxu0 %v418
    %542 = vmatprep.subr.mxu0 %v436
    %543 = vmatpush1.msra.mxu0 %v437
    %544 = vmatprep.subr.mxu0 %v455
    %545 = vmatpush1.msra.mxu0 %v456
    %546 = vmatprep.subr.mxu0 %v374
    %547 = vmatpush1.msra.mxu0 %v373
    %548 = vmatprep.subr.mxu0 %v473
    %549 = vmatpush1.msra.mxu0 %v474
    %550 = vmatprep.subr.mxu0 %v492
    %551 = vmatpush1.msra.mxu0 %v493
    %552 = vmatprep.subr.mxu0 %v511
    %553 = vmatpush1.msra.mxu0 %v512
    %554 = vmatprep.subr.mxu0 %v530
    %555 = vmatpush1.msra.mxu0 %v531
    %556 = vmatprep.subr.mxu0 0.0
    %557 = vmatpush1.msra.mxu0 0.0
    %558 = vmatprep.subr.mxu0 0.0
    %559 = vmatpush1.msra.mxu0 0.0
    %560 = vmatprep.subr.mxu0 0.0
    %561 = vmatpush1.msra.mxu0 0.0
    %562 = vmatprep.subr.mxu0 0.0
    %563 = vmatpush1.msra.mxu0 0.0
    %564 = vmatprep.subr.mxu0 0.0
    %565 = vmatpush1.msra.mxu0 0.0
    %566 = vmatprep.subr.mxu0 0.0
    %567 = vmatpush1.msra.mxu0 0.0
    %568 = vmatprep.subr.mxu0 0.0
    %569 = vmatpush1.msra.mxu0 0.0
    %570 = vmatprep.subr.mxu0 0.0
    %571 = vmatpush1.msra.mxu0 0.0
    %572 = vmatprep.subr.mxu0 0.0
    %573 = vmatpush1.msra.mxu0 0.0
    %574 = vmatprep.subr.mxu0 0.0
    %575 = vmatpush1.msra.mxu0 0.0
    %576 = vmatprep.subr.mxu0 0.0
    %577 = vmatpush1.msra.mxu0 0.0
    %578 = vmatprep.subr.mxu0 0.0
    %579 = vmatpush1.msra.mxu0 0.0
    %580 = vmatprep.subr.mxu0 0.0
    %581 = vmatpush1.msra.mxu0 0.0
    %582 = vmatprep.subr.mxu0 0.0
    %583 = vmatpush1.msra.mxu0 0.0
    %584 = vmatprep.subr.mxu0 0.0
    %585 = vmatpush1.msra.mxu0 0.0
    %586 = vmatprep.subr.mxu0 0.0
    %587 = vmatpush1.msra.mxu0 0.0
    %588 = vmatprep.subr.mxu0 0.0
    %589 = vmatpush1.msra.mxu0 0.0
    %590 = vmatprep.subr.mxu0 0.0
    %591 = vmatpush1.msra.mxu0 0.0
    %592 = vmatprep.subr.mxu0 0.0
    %593 = vmatpush1.msra.mxu0 0.0
    %594 = vmatprep.subr.mxu0 0.0
    %595 = vmatpush1.msra.mxu0 0.0
    %596 = vmatprep.subr.mxu0 0.0
    %597 = vmatpush1.msra.mxu0 0.0
    %598 = vmatprep.subr.mxu0 0.0
    %599 = vmatpush1.msra.mxu0 0.0
    %600 = vmatprep.subr.mxu0 0.0
    %601 = vmatpush1.msra.mxu0 0.0
    %602 = vmatprep.mubr.f32.mxu0 0.0
    %603 = vmatmul.mubr.f32.gmra.mrb[0].mxu0 %v536
    %v604 = vpop.f32.mrb[0].mxu0
    %v605 = vadd.f32 0.0, %v604
    %v606 = vpop.f32.mrb[0].mxu0
    %v607 = vadd.f32 0.0, %v606
    %608 = vdwg.mxu0
    %609 = vmatprep.subr.mxu0 %v396
    %610 = vmatpush1.msra.mxu0 %v397
    %611 = vmatprep.subr.mxu0 %v415
    %612 = vmatpush1.msra.mxu0 %v416
    %613 = vmatprep.subr.mxu0 %v434
    %614 = vmatpush1.msra.mxu0 %v435
    %615 = vmatprep.subr.mxu0 %v453
    %616 = vmatpush1.msra.mxu0 %v454
    %617 = vmatprep.subr.mxu0 %v376
    %618 = vmatpush1.msra.mxu0 %v375
    %619 = vmatprep.subr.mxu0 %v471
    %620 = vmatpush1.msra.mxu0 %v472
    %621 = vmatprep.subr.mxu0 %v490
    %622 = vmatpush1.msra.mxu0 %v491
    %623 = vmatprep.subr.mxu0 %v509
    %624 = vmatpush1.msra.mxu0 %v510
    %625 = vmatprep.subr.mxu0 %v528
    %626 = vmatpush1.msra.mxu0 %v529
    %627 = vmatprep.subr.mxu0 0.0
    %628 = vmatpush1.msra.mxu0 0.0
    %629 = vmatprep.subr.mxu0 0.0
    %630 = vmatpush1.msra.mxu0 0.0
    %631 = vmatprep.subr.mxu0 0.0
    %632 = vmatpush1.msra.mxu0 0.0
    %633 = vmatprep.subr.mxu0 0.0
    %634 = vmatpush1.msra.mxu0 0.0
    %635 = vmatprep.subr.mxu0 0.0
    %636 = vmatpush1.msra.mxu0 0.0
    %637 = vmatprep.subr.mxu0 0.0
    %638 = vmatpush1.msra.mxu0 0.0
    %639 = vmatprep.subr.mxu0 0.0
    %640 = vmatpush1.msra.mxu0 0.0
    %641 = vmatprep.subr.mxu0 0.0
    %642 = vmatpush1.msra.mxu0 0.0
    %643 = vmatprep.subr.mxu0 0.0
    %644 = vmatpush1.msra.mxu0 0.0
    %645 = vmatprep.subr.mxu0 0.0
    %646 = vmatpush1.msra.mxu0 0.0
    %647 = vmatprep.subr.mxu0 0.0
    %648 = vmatpush1.msra.mxu0 0.0
    %649 = vmatprep.subr.mxu0 0.0
    %650 = vmatpush1.msra.mxu0 0.0
    %651 = vmatprep.subr.mxu0 0.0
    %652 = vmatpush1.msra.mxu0 0.0
    %653 = vmatprep.subr.mxu0 0.0
    %654 = vmatpush1.msra.mxu0 0.0
    %655 = vmatprep.subr.mxu0 0.0
    %656 = vmatpush1.msra.mxu0 0.0
    %657 = vmatprep.subr.mxu0 0.0
    %658 = vmatpush1.msra.mxu0 0.0
    %659 = vmatprep.subr.mxu0 0.0
    %660 = vmatpush1.msra.mxu0 0.0
    %661 = vmatprep.subr.mxu0 0.0
    %662 = vmatpush1.msra.mxu0 0.0
    %663 = vmatprep.subr.mxu0 0.0
    %664 = vmatpush1.msra.mxu0 0.0
    %665 = vmatprep.subr.mxu0 0.0
    %666 = vmatpush1.msra.mxu0 0.0
    %667 = vmatprep.subr.mxu0 0.0
    %668 = vmatpush1.msra.mxu0 0.0
    %669 = vmatprep.subr.mxu0 0.0
    %670 = vmatpush1.msra.mxu0 0.0
    %671 = vmatprep.subr.mxu0 0.0
    %672 = vmatpush1.msra.mxu0 0.0
    %673 = vmatprep.mubr.f32.mxu0 0.0
    %674 = vmatmul.mubr.f32.gmra.mrb[0].mxu0 %v536
    %v675 = vpop.f32.mrb[0].mxu0
    %v676 = vadd.f32 0.0, %v675
    %v677 = vpop.f32.mrb[0].mxu0
    %v678 = vadd.f32 0.0, %v677
    %679 = vdwg.mxu0
    %680 = vmatprep.subr.mxu0 %v394
    %681 = vmatpush1.msra.mxu0 %v395
    %682 = vmatprep.subr.mxu0 %v413
    %683 = vmatpush1.msra.mxu0 %v414
    %684 = vmatprep.subr.mxu0 %v432
    %685 = vmatpush1.msra.mxu0 %v433
    %686 = vmatprep.subr.mxu0 %v451
    %687 = vmatpush1.msra.mxu0 %v452
    %688 = vmatprep.subr.mxu0 %v378
    %689 = vmatpush1.msra.mxu0 %v377
    %690 = vmatprep.subr.mxu0 %v475
    %691 = vmatpush1.msra.mxu0 %v470
    %692 = vmatprep.subr.mxu0 %v494
    %693 = vmatpush1.msra.mxu0 %v489
    %694 = vmatprep.subr.mxu0 %v513
    %695 = vmatpush1.msra.mxu0 %v508
    %696 = vmatprep.subr.mxu0 %v532
    %697 = vmatpush1.msra.mxu0 %v527
    %698 = vmatprep.subr.mxu0 0.0
    %699 = vmatpush1.msra.mxu0 0.0
    %700 = vmatprep.subr.mxu0 0.0
    %701 = vmatpush1.msra.mxu0 0.0
    %702 = vmatprep.subr.mxu0 0.0
    %703 = vmatpush1.msra.mxu0 0.0
    %704 = vmatprep.subr.mxu0 0.0
    %705 = vmatpush1.msra.mxu0 0.0
    %706 = vmatprep.subr.mxu0 0.0
    %707 = vmatpush1.msra.mxu0 0.0
    %708 = vmatprep.subr.mxu0 0.0
    %709 = vmatpush1.msra.mxu0 0.0
    %710 = vmatprep.subr.mxu0 0.0
    %711 = vmatpush1.msra.mxu0 0.0
    %712 = vmatprep.subr.mxu0 0.0
    %713 = vmatpush1.msra.mxu0 0.0
    %714 = vmatprep.subr.mxu0 0.0
    %715 = vmatpush1.msra.mxu0 0.0
    %716 = vmatprep.subr.mxu0 0.0
    %717 = vmatpush1.msra.mxu0 0.0
    %718 = vmatprep.subr.mxu0 0.0
    %719 = vmatpush1.msra.mxu0 0.0
    %720 = vmatprep.subr.mxu0 0.0
    %721 = vmatpush1.msra.mxu0 0.0
    %722 = vmatprep.subr.mxu0 0.0
    %723 = vmatpush1.msra.mxu0 0.0
    %724 = vmatprep.subr.mxu0 0.0
    %725 = vmatpush1.msra.mxu0 0.0
    %726 = vmatprep.subr.mxu0 0.0
    %727 = vmatpush1.msra.mxu0 0.0
    %728 = vmatprep.subr.mxu0 0.0
    %729 = vmatpush1.msra.mxu0 0.0
    %730 = vmatprep.subr.mxu0 0.0
    %731 = vmatpush1.msra.mxu0 0.0
    %732 = vmatprep.subr.mxu0 0.0
    %733 = vmatpush1.msra.mxu0 0.0
    %734 = vmatprep.subr.mxu0 0.0
    %735 = vmatpush1.msra.mxu0 0.0
    %736 = vmatprep.subr.mxu0 0.0
    %737 = vmatpush1.msra.mxu0 0.0
    %738 = vmatprep.subr.mxu0 0.0
    %739 = vmatpush1.msra.mxu0 0.0
    %740 = vmatprep.subr.mxu0 0.0
    %741 = vmatpush1.msra.mxu0 0.0
    %742 = vmatprep.subr.mxu0 0.0
    %743 = vmatpush1.msra.mxu0 0.0
    %744 = vmatprep.mubr.f32.mxu0 0.0
    %745 = vmatmul.mubr.f32.gmra.mrb[0].mxu0 %v536
    %v746 = vpop.f32.mrb[0].mxu0
    %v747 = vadd.f32 0.0, %v746
    %v748 = vpop.f32.mrb[0].mxu0
    %v749 = vadd.f32 0.0, %v748
    %750 = vdwg.mxu0
    %v751 = vmul.f32 %v605, %v280
    %v752 = vmul.f32 %v607, %v284
    %v753 = vmul.f32 %v676, %v288
    %v754 = vmul.f32 %v678, %v292
    %v755 = vmul.f32 %v747, %v296
    %v756 = vmul.f32 %v749, %v300
    %v757 = vadd.f32 %v751, %v752
    %v758 = vadd.f32 %v757, %v753
    %v759 = vadd.f32 %v758, %v754
    %v760 = vadd.f32 %v759, %v755
    %v761 = vadd.f32 %v760, %v756
    %762 = vadd.xlane.f32.xlu0 %v761
    %v763 = vpop.xlane.xlu0 %762
    %v764 = vmul.f32 %v763, 0.001953125
    %v765 = vmul.f32 %v751, %v751
    %v766 = vmul.f32 %v752, %v752
    %v767 = vmul.f32 %v753, %v753
    %v768 = vmul.f32 %v754, %v754
    %v769 = vmul.f32 %v755, %v755
    %v770 = vmul.f32 %v756, %v756
    %v771 = vadd.f32 %v765, %v766
    %v772 = vadd.f32 %v771, %v767
    %v773 = vadd.f32 %v772, %v768
    %v774 = vadd.f32 %v773, %v769
    %v775 = vadd.f32 %v774, %v770
    %776 = vadd.xlane.f32.xlu0 %v775
    %v777 = vpop.xlane.xlu0 %776
    %v778 = vmul.f32 %v777, 0.001953125
    %v779 = vmul.f32 %v764, %v764
    %v780 = vsub.f32 %v778, %v779
    %v781 = vmax.f32 %v780, 0.0
    %v782 = vadd.f32 %v781, 1e-05
    %v783 = vrsqrt.pop %v782
    %v784 = vld [vmem:[%s6] sm:$0xff]
    %v785 = vmul.f32 %v783, %v784
    %v786 = vld [vmem:[%s7] sm:$0xff]
    %v787 = vmul.f32 %v764, %v785
    %v788 = vsub.f32 %v786, %v787
    %790 = vset.pattern.permute.xlu0 0
    %791 = vperm.xlu0 %790, %v785
    %v792 = vpop.permute.xlu0 %791
    %v794 = vmul.f32 %v605, %v792
    %v795 = vmul.f32 %v607, %v792
    %v796 = vmul.f32 %v676, %v792
    %v797 = vmul.f32 %v678, %v792
    %v798 = vmul.f32 %v747, %v792
    %v799 = vmul.f32 %v749, %v792
    %801 = vset.pattern.permute.xlu0 0
    %802 = vperm.xlu0 %801, %v788
    %v803 = vpop.permute.xlu0 %802
    %v805 = vadd.f32 %v794, %v803
    %v806 = vadd.f32 %v795, %v803
    %v807 = vadd.f32 %v796, %v803
    %v808 = vadd.f32 %v797, %v803
    %v809 = vadd.f32 %v798, %v803
    %v810 = vadd.f32 %v799, %v803
    %v811 = vmax.f32 %v805, 0.0
    %v812 = vmax.f32 %v806, 0.0
    %v813 = vmax.f32 %v807, 0.0
    %v814 = vmax.f32 %v808, 0.0
    %v815 = vmax.f32 %v809, 0.0
    %v816 = vmax.f32 %v810, 0.0
    %v817 = vld [vmem:[%s8] sm:$0xff]
    %v819 = vsel %vm59, %v817, 0
    %821 = vmatprep.subr.mxu0 %v812
    %822 = vmatpush1.msra.mxu0 %v811
    %823 = vmatprep.subr.mxu0 0.0
    %824 = vmatpush1.msra.mxu0 0.0
    %825 = vmatprep.subr.mxu0 0.0
    %826 = vmatpush1.msra.mxu0 0.0
    %827 = vmatprep.subr.mxu0 0.0
    %828 = vmatpush1.msra.mxu0 0.0
    %829 = vmatprep.subr.mxu0 0.0
    %830 = vmatpush1.msra.mxu0 0.0
    %831 = vmatprep.subr.mxu0 0.0
    %832 = vmatpush1.msra.mxu0 0.0
    %833 = vmatprep.subr.mxu0 0.0
    %834 = vmatpush1.msra.mxu0 0.0
    %835 = vmatprep.subr.mxu0 0.0
    %836 = vmatpush1.msra.mxu0 0.0
    %837 = vmatprep.subr.mxu0 0.0
    %838 = vmatpush1.msra.mxu0 0.0
    %839 = vmatprep.subr.mxu0 0.0
    %840 = vmatpush1.msra.mxu0 0.0
    %841 = vmatprep.subr.mxu0 0.0
    %842 = vmatpush1.msra.mxu0 0.0
    %843 = vmatprep.subr.mxu0 0.0
    %844 = vmatpush1.msra.mxu0 0.0
    %845 = vmatprep.subr.mxu0 0.0
    %846 = vmatpush1.msra.mxu0 0.0
    %847 = vmatprep.subr.mxu0 0.0
    %848 = vmatpush1.msra.mxu0 0.0
    %849 = vmatprep.subr.mxu0 0.0
    %850 = vmatpush1.msra.mxu0 0.0
    %851 = vmatprep.subr.mxu0 0.0
    %852 = vmatpush1.msra.mxu0 0.0
    %853 = vmatprep.subr.mxu0 0.0
    %854 = vmatpush1.msra.mxu0 0.0
    %855 = vmatprep.subr.mxu0 0.0
    %856 = vmatpush1.msra.mxu0 0.0
    %857 = vmatprep.subr.mxu0 0.0
    %858 = vmatpush1.msra.mxu0 0.0
    %859 = vmatprep.subr.mxu0 0.0
    %860 = vmatpush1.msra.mxu0 0.0
    %861 = vmatprep.subr.mxu0 0.0
    %862 = vmatpush1.msra.mxu0 0.0
    %863 = vmatprep.subr.mxu0 0.0
    %864 = vmatpush1.msra.mxu0 0.0
    %865 = vmatprep.subr.mxu0 0.0
    %866 = vmatpush1.msra.mxu0 0.0
    %867 = vmatprep.subr.mxu0 0.0
    %868 = vmatpush1.msra.mxu0 0.0
    %869 = vmatprep.subr.mxu0 0.0
    %870 = vmatpush1.msra.mxu0 0.0
    %871 = vmatprep.subr.mxu0 0.0
    %872 = vmatpush1.msra.mxu0 0.0
    %873 = vmatprep.subr.mxu0 0.0
    %874 = vmatpush1.msra.mxu0 0.0
    %875 = vmatprep.subr.mxu0 0.0
    %876 = vmatpush1.msra.mxu0 0.0
    %877 = vmatprep.subr.mxu0 0.0
    %878 = vmatpush1.msra.mxu0 0.0
    %879 = vmatprep.subr.mxu0 0.0
    %880 = vmatpush1.msra.mxu0 0.0
    %881 = vmatprep.subr.mxu0 0.0
    %882 = vmatpush1.msra.mxu0 0.0
    %883 = vmatprep.subr.mxu0 0.0
    %884 = vmatpush1.msra.mxu0 0.0
    %885 = vmatprep.mubr.f32.mxu0 0.0
    %886 = vmatmul.mubr.f32.gmra.mrb[0].mxu0 %v819
    %v887 = vpop.f32.mrb[0].mxu0
    %v888 = vadd.f32 0.0, %v887
    %v889 = vpop.f32.mrb[0].mxu0
    %v890 = vadd.f32 0.0, %v889
    %891 = vdwg.mxu0
    %892 = vmatprep.subr.mxu0 %v814
    %893 = vmatpush1.msra.mxu0 %v813
    %894 = vmatprep.subr.mxu0 0.0
    %895 = vmatpush1.msra.mxu0 0.0
    %896 = vmatprep.subr.mxu0 0.0
    %897 = vmatpush1.msra.mxu0 0.0
    %898 = vmatprep.subr.mxu0 0.0
    %899 = vmatpush1.msra.mxu0 0.0
    %900 = vmatprep.subr.mxu0 0.0
    %901 = vmatpush1.msra.mxu0 0.0
    %902 = vmatprep.subr.mxu0 0.0
    %903 = vmatpush1.msra.mxu0 0.0
    %904 = vmatprep.subr.mxu0 0.0
    %905 = vmatpush1.msra.mxu0 0.0
    %906 = vmatprep.subr.mxu0 0.0
    %907 = vmatpush1.msra.mxu0 0.0
    %908 = vmatprep.subr.mxu0 0.0
    %909 = vmatpush1.msra.mxu0 0.0
    %910 = vmatprep.subr.mxu0 0.0
    %911 = vmatpush1.msra.mxu0 0.0
    %912 = vmatprep.subr.mxu0 0.0
    %913 = vmatpush1.msra.mxu0 0.0
    %914 = vmatprep.subr.mxu0 0.0
    %915 = vmatpush1.msra.mxu0 0.0
    %916 = vmatprep.subr.mxu0 0.0
    %917 = vmatpush1.msra.mxu0 0.0
    %918 = vmatprep.subr.mxu0 0.0
    %919 = vmatpush1.msra.mxu0 0.0
    %920 = vmatprep.subr.mxu0 0.0
    %921 = vmatpush1.msra.mxu0 0.0
    %922 = vmatprep.subr.mxu0 0.0
    %923 = vmatpush1.msra.mxu0 0.0
    %924 = vmatprep.subr.mxu0 0.0
    %925 = vmatpush1.msra.mxu0 0.0
    %926 = vmatprep.subr.mxu0 0.0
    %927 = vmatpush1.msra.mxu0 0.0
    %928 = vmatprep.subr.mxu0 0.0
    %929 = vmatpush1.msra.mxu0 0.0
    %930 = vmatprep.subr.mxu0 0.0
    %931 = vmatpush1.msra.mxu0 0.0
    %932 = vmatprep.subr.mxu0 0.0
    %933 = vmatpush1.msra.mxu0 0.0
    %934 = vmatprep.subr.mxu0 0.0
    %935 = vmatpush1.msra.mxu0 0.0
    %936 = vmatprep.subr.mxu0 0.0
    %937 = vmatpush1.msra.mxu0 0.0
    %938 = vmatprep.subr.mxu0 0.0
    %939 = vmatpush1.msra.mxu0 0.0
    %940 = vmatprep.subr.mxu0 0.0
    %941 = vmatpush1.msra.mxu0 0.0
    %942 = vmatprep.subr.mxu0 0.0
    %943 = vmatpush1.msra.mxu0 0.0
    %944 = vmatprep.subr.mxu0 0.0
    %945 = vmatpush1.msra.mxu0 0.0
    %946 = vmatprep.subr.mxu0 0.0
    %947 = vmatpush1.msra.mxu0 0.0
    %948 = vmatprep.subr.mxu0 0.0
    %949 = vmatpush1.msra.mxu0 0.0
    %950 = vmatprep.subr.mxu0 0.0
    %951 = vmatpush1.msra.mxu0 0.0
    %952 = vmatprep.subr.mxu0 0.0
    %953 = vmatpush1.msra.mxu0 0.0
    %954 = vmatprep.subr.mxu0 0.0
    %955 = vmatpush1.msra.mxu0 0.0
    %956 = vmatprep.mubr.f32.mxu0 0.0
    %957 = vmatmul.mubr.f32.gmra.mrb[0].mxu0 %v819
    %v958 = vpop.f32.mrb[0].mxu0
    %v959 = vadd.f32 0.0, %v958
    %v960 = vpop.f32.mrb[0].mxu0
    %v961 = vadd.f32 0.0, %v960
    %962 = vdwg.mxu0
    %963 = vmatprep.subr.mxu0 %v816
    %964 = vmatpush1.msra.mxu0 %v815
    %965 = vmatprep.subr.mxu0 0.0
    %966 = vmatpush1.msra.mxu0 0.0
    %967 = vmatprep.subr.mxu0 0.0
    %968 = vmatpush1.msra.mxu0 0.0
    %969 = vmatprep.subr.mxu0 0.0
    %970 = vmatpush1.msra.mxu0 0.0
    %971 = vmatprep.subr.mxu0 0.0
    %972 = vmatpush1.msra.mxu0 0.0
    %973 = vmatprep.subr.mxu0 0.0
    %974 = vmatpush1.msra.mxu0 0.0
    %975 = vmatprep.subr.mxu0 0.0
    %976 = vmatpush1.msra.mxu0 0.0
    %977 = vmatprep.subr.mxu0 0.0
    %978 = vmatpush1.msra.mxu0 0.0
    %979 = vmatprep.subr.mxu0 0.0
    %980 = vmatpush1.msra.mxu0 0.0
    %981 = vmatprep.subr.mxu0 0.0
    %982 = vmatpush1.msra.mxu0 0.0
    %983 = vmatprep.subr.mxu0 0.0
    %984 = vmatpush1.msra.mxu0 0.0
    %985 = vmatprep.subr.mxu0 0.0
    %986 = vmatpush1.msra.mxu0 0.0
    %987 = vmatprep.subr.mxu0 0.0
    %988 = vmatpush1.msra.mxu0 0.0
    %989 = vmatprep.subr.mxu0 0.0
    %990 = vmatpush1.msra.mxu0 0.0
    %991 = vmatprep.subr.mxu0 0.0
    %992 = vmatpush1.msra.mxu0 0.0
    %993 = vmatprep.subr.mxu0 0.0
    %994 = vmatpush1.msra.mxu0 0.0
    %995 = vmatprep.subr.mxu0 0.0
    %996 = vmatpush1.msra.mxu0 0.0
    %997 = vmatprep.subr.mxu0 0.0
    %998 = vmatpush1.msra.mxu0 0.0
    %999 = vmatprep.subr.mxu0 0.0
    %1000 = vmatpush1.msra.mxu0 0.0
    %1001 = vmatprep.subr.mxu0 0.0
    %1002 = vmatpush1.msra.mxu0 0.0
    %1003 = vmatprep.subr.mxu0 0.0
    %1004 = vmatpush1.msra.mxu0 0.0
    %1005 = vmatprep.subr.mxu0 0.0
    %1006 = vmatpush1.msra.mxu0 0.0
    %1007 = vmatprep.subr.mxu0 0.0
    %1008 = vmatpush1.msra.mxu0 0.0
    %1009 = vmatprep.subr.mxu0 0.0
    %1010 = vmatpush1.msra.mxu0 0.0
    %1011 = vmatprep.subr.mxu0 0.0
    %1012 = vmatpush1.msra.mxu0 0.0
    %1013 = vmatprep.subr.mxu0 0.0
    %1014 = vmatpush1.msra.mxu0 0.0
    %1015 = vmatprep.subr.mxu0 0.0
    %1016 = vmatpush1.msra.mxu0 0.0
    %1017 = vmatprep.subr.mxu0 0.0
    %1018 = vmatpush1.msra.mxu0 0.0
    %1019 = vmatprep.subr.mxu0 0.0
    %1020 = vmatpush1.msra.mxu0 0.0
    %1021 = vmatprep.subr.mxu0 0.0
    %1022 = vmatpush1.msra.mxu0 0.0
    %1023 = vmatprep.subr.mxu0 0.0
    %1024 = vmatpush1.msra.mxu0 0.0
    %1025 = vmatprep.subr.mxu0 0.0
    %1026 = vmatpush1.msra.mxu0 0.0
    %1027 = vmatprep.mubr.f32.mxu0 0.0
    %1028 = vmatmul.mubr.f32.gmra.mrb[0].mxu0 %v819
    %v1029 = vpop.f32.mrb[0].mxu0
    %v1030 = vadd.f32 0.0, %v1029
    %v1031 = vpop.f32.mrb[0].mxu0
    %v1032 = vadd.f32 0.0, %v1031
    %1033 = vdwg.mxu0
    %v1034 = vmul.f32 %v888, %v280
    %v1035 = vmul.f32 %v890, %v284
    %v1036 = vmul.f32 %v959, %v288
    %v1037 = vmul.f32 %v961, %v292
    %v1038 = vmul.f32 %v1030, %v296
    %v1039 = vmul.f32 %v1032, %v300
    %v1040 = vadd.f32 %v1034, %v1035
    %v1041 = vadd.f32 %v1040, %v1036
    %v1042 = vadd.f32 %v1041, %v1037
    %v1043 = vadd.f32 %v1042, %v1038
    %v1044 = vadd.f32 %v1043, %v1039
    %1045 = vadd.xlane.f32.xlu0 %v1044
    %v1046 = vpop.xlane.xlu0 %1045
    %v1047 = vmul.f32 %v1046, 0.001953125
    %v1048 = vmul.f32 %v1034, %v1034
    %v1049 = vmul.f32 %v1035, %v1035
    %v1050 = vmul.f32 %v1036, %v1036
    %v1051 = vmul.f32 %v1037, %v1037
    %v1052 = vmul.f32 %v1038, %v1038
    %v1053 = vmul.f32 %v1039, %v1039
    %v1054 = vadd.f32 %v1048, %v1049
    %v1055 = vadd.f32 %v1054, %v1050
    %v1056 = vadd.f32 %v1055, %v1051
    %v1057 = vadd.f32 %v1056, %v1052
    %v1058 = vadd.f32 %v1057, %v1053
    %1059 = vadd.xlane.f32.xlu0 %v1058
    %v1060 = vpop.xlane.xlu0 %1059
    %v1061 = vmul.f32 %v1060, 0.001953125
    %v1062 = vmul.f32 %v1047, %v1047
    %v1063 = vsub.f32 %v1061, %v1062
    %v1064 = vmax.f32 %v1063, 0.0
    %v1065 = vadd.f32 %v1064, 1e-05
    %v1066 = vrsqrt.pop %v1065
    %v1067 = vld [vmem:[%s9] sm:$0xff]
    %v1068 = vmul.f32 %v1066, %v1067
    %v1069 = vld [vmem:[%s10] sm:$0xff]
    %v1070 = vmul.f32 %v1047, %v1068
    %v1071 = vsub.f32 %v1069, %v1070
    %1073 = vset.pattern.permute.xlu0 0
    %1074 = vperm.xlu0 %1073, %v1068
    %v1075 = vpop.permute.xlu0 %1074
    %v1077 = vmul.f32 %v888, %v1075
    %v1078 = vmul.f32 %v890, %v1075
    %v1079 = vmul.f32 %v959, %v1075
    %v1080 = vmul.f32 %v961, %v1075
    %v1081 = vmul.f32 %v1030, %v1075
    %v1082 = vmul.f32 %v1032, %v1075
    %1084 = vset.pattern.permute.xlu0 0
    %1085 = vperm.xlu0 %1084, %v1071
    %v1086 = vpop.permute.xlu0 %1085
    %v1088 = vadd.f32 %v1077, %v1086
    %v1089 = vadd.f32 %v1078, %v1086
    %v1090 = vadd.f32 %v1079, %v1086
    %v1091 = vadd.f32 %v1080, %v1086
    %v1092 = vadd.f32 %v1081, %v1086
    %v1093 = vadd.f32 %v1082, %v1086
    %v1094 = vadd.f32 %v1088, %v51
    %v1095 = vadd.f32 %v1089, %v52
    %v1096 = vadd.f32 %v1090, %v53
    %v1097 = vadd.f32 %v1091, %v54
    %v1098 = vadd.f32 %v1092, %v55
    %v1099 = vadd.f32 %v1093, %v56
    %v1100 = vmax.f32 %v1094, 0.0
    %v1101 = vmax.f32 %v1095, 0.0
    %v1102 = vmax.f32 %v1096, 0.0
    %v1103 = vmax.f32 %v1097, 0.0
    %v1104 = vmax.f32 %v1098, 0.0
    %v1105 = vmax.f32 %v1099, 0.0
    %1106 = vst [vmem:[#allocation5] sm:$0xff] %v1100
    %1107 = vst [vmem:[#allocation5 + $0x8] sm:$0xff] %v1101
    %1108 = vst [vmem:[#allocation5 + $0x10] sm:$0xff] %v1102
    %1109 = vst [vmem:[#allocation5 + $0x18] sm:$0xff] %v1103
    %1110 = vst [vmem:[#allocation5 + $0x20] sm:$0xff] %v1104
    %1111 = vst [vmem:[#allocation5 + $0x28] sm:$0xff] %v1105
    // Predicated region
    $region50: #{tpu_custom_call.1} parent=1 // pred_check
      _
    $region51: #{tpu_custom_call.1} parent=1 // pred_check_branch
      %1113 = sbr.rel (0) target = $region53
    $region52: #{tpu_custom_call.1} parent=1 // pred_region
      %s1115 = ssub.s32 768, 768
      %1116 = vsyncadd [#allocation4], %s1115
      %s1118 = sshll.u32 [#allocation5], 4
      %s1119 = int_to_ptr.vmem [resolvable:$true] %s1118
      %1121 = dma.vmem_to_hbm [thread:$0]  %s1119, 768, %s11, [#allocation4]
    $region53: #{tpu_custom_call.1} parent=1 // pred_fallthru
      _
    // Predicated region
    $region54: #{tpu_custom_call.1} parent=1 // pred_check
      _
    $region55: #{tpu_custom_call.1} parent=1 // pred_check_branch
      %1123 = sbr.rel (0) target = $region57
    $region56: #{tpu_custom_call.1} parent=1 // pred_region
      %1124 = dma.done [#allocation4], 768
    $region57: #{tpu_custom_call.1} parent=1 // pred_fallthru
      _
    %1125 = vsyncpa [#allocation3], 1
    %1126 = vsyncpa [#allocation4], 1

</llo_original>
